<compile_context>
chip_gen: v5e
topology: v5e:2x2
jax: 0.10.0
libtpu: 0.0.40
codegen_flags: <defaults>
</compile_context>

<pallas_src>
import jax
import jax.numpy as jnp
from jax import lax
from jax.experimental import pallas as pl
from jax.experimental.pallas import tpu as pltpu

IN_DIM = 10
HID_DIM = 5
OUT_DIM = 2


def mlp_kernel(x_ref, w1t_ref, b1_ref, w2t_ref, b2_ref, oT_ref):
    # x_ref : (TB, IN_DIM)  natural row-major layout (one contiguous DMA/step)
    # w1t   : (HID, IN), b1: (HID, 1), w2t: (OUT, HID), b2: (OUT, 1)
    # oT_ref: (OUT, TB)     lane-dense transposed output
    #
    # hT[h, b] = sum_k w1t[h, k] * x[b, k]  -- NT contraction folds the x
    # "transpose" into the matmul operand feed; no standalone transpose op.
    hT = lax.dot_general(
        w1t_ref[...], x_ref[...],
        dimension_numbers=(((1,), (1,)), ((), ())),
        preferred_element_type=jnp.float32,
    ) + b1_ref[...]
    hT = jnp.maximum(hT, 0.0)  # ReLU
    oT = jnp.dot(w2t_ref[...], hT, preferred_element_type=jnp.float32) + b2_ref[...]
    oT_ref[...] = oT.astype(oT_ref.dtype)


def _round_up(n: int, m: int) -> int:
    return (n + m - 1) // m * m


def _batch_axis_semantics(num_blocks: int):
    """Prefer explicit 2-TensorCore sharding of the batch axis on v7x."""
    core_parallel = getattr(pltpu, "CORE_PARALLEL", None)
    try:
        kind = jax.devices()[0].device_kind.lower()
    except Exception:
        kind = ""
    multi_tc = ("v7" in kind) or ("tpu7" in kind)
    if core_parallel is not None and multi_tc and num_blocks % 2 == 0:
        return (core_parallel,)
    return ("parallel",)


def net_forward(x, w1, b1, w2, b2, *, max_batch_tile: int = 8192):
    """out = relu(x @ w1 + b1) @ w2 + b2 via a batch-tiled Pallas kernel."""
    B = x.shape[0]

    # Batch tile lives on the output lane axis -> multiple of 128.  Large tiles
    # amortize the ~0.35 us/step overhead; 8192 keeps the lane-padded x buffers
    # (2 x TB x 128 x 4B ~= 8 MiB) comfortably inside the 32 MiB scoped VMEM
    # budget on every generation (v7x has only 64 MiB physical).
    TB = min(max_batch_tile, _round_up(B, 128))
    grid = (pl.cdiv(B, TB),)  # Pallas masks the partial edge block's writeback.

    # Only O(100)-byte parameter reshapes happen in the wrapper; x is untouched.
    w1t = w1.T                      # (HID, IN)
    w2t = w2.T                      # (OUT, HID)
    b1c = b1.reshape(HID_DIM, 1)    # (HID, 1)
    b2c = b2.reshape(OUT_DIM, 1)    # (OUT, 1)

    cost = pl.CostEstimate(
        flops=2 * B * (IN_DIM * HID_DIM + HID_DIM * OUT_DIM),
        transcendentals=0,
        bytes_accessed=4 * (B * (IN_DIM + OUT_DIM)
                            + IN_DIM * HID_DIM + HID_DIM * OUT_DIM
                            + HID_DIM + OUT_DIM),
    )

    def run(dim_semantics):
        return pl.pallas_call(
            mlp_kernel,
            out_shape=jax.ShapeDtypeStruct((OUT_DIM, B), jnp.float32),
            grid_spec=pltpu.PrefetchScalarGridSpec(
                num_scalar_prefetch=0,
                grid=grid,
                in_specs=[
                    # x streams in native layout: one contiguous DMA of
                    # TB*IN_DIM*4 bytes per step (no wrapper transpose/pad).
                    pl.BlockSpec((TB, IN_DIM), lambda i: (i, 0)),
                    # Constant-index params: fetched once, stay VMEM-resident
                    # (block index never changes -> no per-step re-DMA).
                    pl.BlockSpec((HID_DIM, IN_DIM), lambda i: (0, 0)),
                    pl.BlockSpec((HID_DIM, 1), lambda i: (0, 0)),
                    pl.BlockSpec((OUT_DIM, HID_DIM), lambda i: (0, 0)),
                    pl.BlockSpec((OUT_DIM, 1), lambda i: (0, 0)),
                ],
                # Output kept transposed: last dim = TB -> lane-dense stores.
                out_specs=pl.BlockSpec((OUT_DIM, TB), lambda i: (0, i)),
            ),
            compiler_params=pltpu.CompilerParams(
                dimension_semantics=dim_semantics,
                vmem_limit_bytes=32 * 1024 * 1024,
            ),
            cost_estimate=cost,
        )(x, w1t, b1c, w2t, b2c)

    dim_semantics = _batch_axis_semantics(grid[0])
    try:
        outT = run(dim_semantics)
    except Exception:
        if dim_semantics == ("parallel",):
            raise
        # Graceful fallback if CORE_PARALLEL is unsupported on this chip/runtime.
        outT = run(("parallel",))

    return outT.T  # (B, OUT_DIM); only 8 B/sample is re-laid-out here.


def init_params(key):
    # Deterministic init mimicking nn.Linear's uniform(-1/sqrt(fan_in), +1/sqrt(fan_in)).
    k1, k2, k3, k4 = jax.random.split(key, 4)
    bound1 = 1.0 / jnp.sqrt(IN_DIM)
    bound2 = 1.0 / jnp.sqrt(HID_DIM)
    w1 = jax.random.uniform(k1, (IN_DIM, HID_DIM), jnp.float32, -bound1, bound1)
    b1 = jax.random.uniform(k2, (HID_DIM,), jnp.float32, -bound1, bound1)
    w2 = jax.random.uniform(k3, (HID_DIM, OUT_DIM), jnp.float32, -bound2, bound2)
    b2 = jax.random.uniform(k4, (OUT_DIM,), jnp.float32, -bound2, bound2)
    return w1, b1, w2, b2


if __name__ == "__main__":
    key = jax.random.PRNGKey(0)
    kx, kp = jax.random.split(key)
    w1, b1, w2, b2 = init_params(kp)

    def reference(x):
        return jnp.maximum(x @ w1 + b1, 0.0) @ w2 + b2

    # Case 1: single large lane-dense tile (default tiling).
    B1 = 2048
    x1 = jax.random.normal(kx, (B1, IN_DIM), jnp.float32)
    out1 = jax.block_until_ready(net_forward(x1, w1, b1, w2, b2))
    assert out1.shape == (B1, OUT_DIM)
    assert jnp.allclose(out1, reference(x1), atol=2e-5), "mismatch vs reference (case 1)"

    # Case 2: multi-step grid with a partial edge block (640 = 2*256 + 128),
    # exercising the cdiv grid + masked edge writeback path.
    B2 = 640
    x2 = jax.random.normal(jax.random.fold_in(kx, 1), (B2, IN_DIM), jnp.float32)
    out2 = jax.block_until_ready(net_forward(x2, w1, b1, w2, b2, max_batch_tile=256))
    assert out2.shape == (B2, OUT_DIM)
    assert jnp.allclose(out2, reference(x2), atol=2e-5), "mismatch vs reference (case 2)"

    print("KERNEL_OK")
</pallas_src>

<mosaic_0001>
module attributes {stable_mosaic.version = 11 : i64} {
  func.func @mlp_kernel(%arg0: i32, %arg1: memref<2048x10xf32, #tpu.memory_space<vmem>>, %arg2: memref<5x10xf32, #tpu.memory_space<vmem>>, %arg3: memref<5x1xf32, #tpu.memory_space<vmem>>, %arg4: memref<2x5xf32, #tpu.memory_space<vmem>>, %arg5: memref<2x1xf32, #tpu.memory_space<vmem>>, %arg6: memref<2x2048xf32, #tpu.memory_space<vmem>>) attributes {dimension_semantics = [#tpu.dimension_semantics<parallel>], iteration_bounds = array<i64: 1>, scalar_prefetch = 0 : i64, scratch_operands = 0 : i64, tpu.core_type = #tpu.core_type<tc>, window_params = [{transform_indices = @transform_0, window_bounds = array<i64: 2048, 10>}, {pipeline_mode = #tpu.pipeline_mode<synchronous>, transform_indices = @transform_1, window_bounds = array<i64: 5, 10>}, {pipeline_mode = #tpu.pipeline_mode<synchronous>, transform_indices = @transform_2, window_bounds = array<i64: 5, 1>}, {pipeline_mode = #tpu.pipeline_mode<synchronous>, transform_indices = @transform_3, window_bounds = array<i64: 2, 5>}, {pipeline_mode = #tpu.pipeline_mode<synchronous>, transform_indices = @transform_4, window_bounds = array<i64: 2, 1>}, {transform_indices = @transform_5, window_bounds = array<i64: 2, 2048>}]} {
    %c0 = arith.constant 0 : index
    %c0_0 = arith.constant 0 : index
    %0 = vector.load %arg2[%c0, %c0_0] : memref<5x10xf32, #tpu.memory_space<vmem>>, vector<5x10xf32>
    %c0_1 = arith.constant 0 : index
    %c0_2 = arith.constant 0 : index
    %1 = vector.load %arg1[%c0_1, %c0_2] : memref<2048x10xf32, #tpu.memory_space<vmem>>, vector<2048x10xf32>
    %cst = arith.constant dense<0.000000e+00> : vector<5x2048xf32>
    %2 = tpu.matmul %0, %1, %cst {dimension_numbers = #tpu.dot_dimension_numbers<[1], [1], [0], [0], [0, 0, 1, 0], [], []>} : vector<5x10xf32>, vector<2048x10xf32>, vector<5x2048xf32> -> vector<5x2048xf32>
    %c0_3 = arith.constant 0 : index
    %c0_4 = arith.constant 0 : index
    %3 = vector.load %arg3[%c0_3, %c0_4] : memref<5x1xf32, #tpu.memory_space<vmem>>, vector<5x1xf32>
    %4 = vector.broadcast %3 : vector<5x1xf32> to vector<5x2048xf32>
    %5 = arith.addf %2, %4 : vector<5x2048xf32>
    %cst_5 = arith.constant 0.000000e+00 : f32
    %6 = vector.broadcast %cst_5 : f32 to vector<5x2048xf32>
    %7 = arith.maximumf %5, %6 : vector<5x2048xf32>
    %c0_6 = arith.constant 0 : index
    %c0_7 = arith.constant 0 : index
    %8 = vector.load %arg4[%c0_6, %c0_7] : memref<2x5xf32, #tpu.memory_space<vmem>>, vector<2x5xf32>
    %cst_8 = arith.constant dense<0.000000e+00> : vector<2x2048xf32>
    %9 = tpu.matmul %8, %7, %cst_8 {dimension_numbers = #tpu.dot_dimension_numbers<[1], [0], [0], [1], [0, 0, 1, 1], [], []>} : vector<2x5xf32>, vector<5x2048xf32>, vector<2x2048xf32> -> vector<2x2048xf32>
    %c0_9 = arith.constant 0 : index
    %c0_10 = arith.constant 0 : index
    %10 = vector.load %arg5[%c0_9, %c0_10] : memref<2x1xf32, #tpu.memory_space<vmem>>, vector<2x1xf32>
    %11 = vector.broadcast %10 : vector<2x1xf32> to vector<2x2048xf32>
    %12 = arith.addf %9, %11 : vector<2x2048xf32>
    %c0_11 = arith.constant 0 : index
    %c0_12 = arith.constant 0 : index
    %13 = vector.load %arg6[%c0_11, %c0_12] : memref<2x2048xf32, #tpu.memory_space<vmem>>, vector<2x2048xf32>
    tpu.vector_store %arg6[%c0_11, %c0_12], %12 {strides = array<i32>} : memref<2x2048xf32, #tpu.memory_space<vmem>>, vector<2x2048xf32>,
    return
  }
  func.func @transform_0(%arg0: i32) -> (i32, i32) {
    %c0_i32 = arith.constant 0 : i32
    %c0_i32_0 = arith.constant 0 : i32
    return %arg0, %c0_i32 : i32, i32
  }
  func.func @transform_1(%arg0: i32) -> (i32, i32) {
    %c0_i32 = arith.constant 0 : i32
    %c0_i32_0 = arith.constant 0 : i32
    %c0_i32_1 = arith.constant 0 : i32
    return %c0_i32, %c0_i32_0 : i32, i32
  }
  func.func @transform_2(%arg0: i32) -> (i32, i32) {
    %c0_i32 = arith.constant 0 : i32
    %c0_i32_0 = arith.constant 0 : i32
    %c0_i32_1 = arith.constant 0 : i32
    return %c0_i32, %c0_i32_0 : i32, i32
  }
  func.func @transform_3(%arg0: i32) -> (i32, i32) {
    %c0_i32 = arith.constant 0 : i32
    %c0_i32_0 = arith.constant 0 : i32
    %c0_i32_1 = arith.constant 0 : i32
    return %c0_i32, %c0_i32_0 : i32, i32
  }
  func.func @transform_4(%arg0: i32) -> (i32, i32) {
    %c0_i32 = arith.constant 0 : i32
    %c0_i32_0 = arith.constant 0 : i32
    %c0_i32_1 = arith.constant 0 : i32
    return %c0_i32, %c0_i32_0 : i32, i32
  }
  func.func @transform_5(%arg0: i32) -> (i32, i32) {
    %c0_i32 = arith.constant 0 : i32
    %c0_i32_0 = arith.constant 0 : i32
    return %c0_i32, %arg0 : i32, i32
  }
}

</mosaic_0001>

<llo_original>
// kernel: tpu_custom_call.1
$region0: #{tpu_custom_call.1}
  #allocation0 [shape = 'u32[]', space=smem, size = 0x4, offset = 0x4, fixed_abs, tag = 'smem constant byte address 0x4 - core index']
  #allocation1 [shape = 'u32[72,128]{1,0:T(1,128)}', space=vmem, size = 0x9000, scoped, tag = 'internal scratch']
  %s0 = inlined_call_operand.vmem [shape: f32[2048,10], index: 0, kind: input, shape index: {}]
  %s1 = inlined_call_operand.vmem [shape: f32[5,10], index: 1, kind: input, shape index: {}]
  %s2 = inlined_call_operand.vmem [shape: f32[5,1], index: 2, kind: input, shape index: {}]
  %s3 = inlined_call_operand.vmem [shape: f32[2,5], index: 3, kind: input, shape index: {}]
  %s4 = inlined_call_operand.vmem [shape: f32[2,1], index: 4, kind: input, shape index: {}]
  %s5 = inlined_call_operand.hbm [shape: f32[2,2048], index: 5, kind: output, shape index: {}]
  %s6 = sld [smem:[#allocation0]]
  $region30: #{tpu_custom_call.1} parent=0
    _
  %s8 = ssub.s32 1, %s6
  %s9 = scalar_select 0, %s8, %s6
  $region1: #{tpu_custom_call.1} parent=0
    #allocation2 [shape = 'u8[16384]{0}', space=vmem, size = 0x4000, scoped, tag = 'output window, operand 0, single buffered']
    #allocation3 [shape = 's32[1]{0}', space=sflag, size = 0x4, scoped, tag = 'scoped memory for tpu_custom_call.1']
    %10 = vsyncpa [#allocation3], 0
    // Predicated region
    $region2: #{tpu_custom_call.1} parent=1 // pred_check
      _
    $region3: #{tpu_custom_call.1} parent=1 // pred_check_branch
      %12 = sbr.rel (0) target = $region5
    $region4: #{tpu_custom_call.1} parent=1 // pred_region
      _
    $region5: #{tpu_custom_call.1} parent=1 // pred_fallthru
      _
    // Predicated region
    $region6: #{tpu_custom_call.1} parent=1 // pred_check
      _
    $region7: #{tpu_custom_call.1} parent=1 // pred_check_branch
      %14 = sbr.rel (0) target = $region9
    $region8: #{tpu_custom_call.1} parent=1 // pred_region
      _
    $region9: #{tpu_custom_call.1} parent=1 // pred_fallthru
      _
    // Predicated region
    $region10: #{tpu_custom_call.1} parent=1 // pred_check
      _
    $region11: #{tpu_custom_call.1} parent=1 // pred_check_branch
      %16 = sbr.rel (0) target = $region13
    $region12: #{tpu_custom_call.1} parent=1 // pred_region
      _
    $region13: #{tpu_custom_call.1} parent=1 // pred_fallthru
      _
    // Predicated region
    $region14: #{tpu_custom_call.1} parent=1 // pred_check
      _
    $region15: #{tpu_custom_call.1} parent=1 // pred_check_branch
      %18 = sbr.rel (0) target = $region17
    $region16: #{tpu_custom_call.1} parent=1 // pred_region
      _
    $region17: #{tpu_custom_call.1} parent=1 // pred_fallthru
      _
    // Predicated region
    $region18: #{tpu_custom_call.1} parent=1 // pred_check
      _
    $region19: #{tpu_custom_call.1} parent=1 // pred_check_branch
      %20 = sbr.rel (0) target = $region21
    $region20: #{tpu_custom_call.1} parent=1 // pred_region
      _
    $region21: #{tpu_custom_call.1} parent=1 // pred_fallthru
      _
    %v21 = vld [vmem:[%s1] sm:$0x1f]
    %v22 = vld [vmem:[%s0] sm:$0xff]
    %v23 = vld [vmem:[%s0 + $0x8] sm:$0xff]
    %v24 = vld [vmem:[%s0 + $0x10] sm:$0xff]
    %v25 = vld [vmem:[%s0 + $0x18] sm:$0xff]
    %v26 = vld [vmem:[%s0 + $0x20] sm:$0xff]
    %v27 = vld [vmem:[%s0 + $0x28] sm:$0xff]
    %v28 = vld [vmem:[%s0 + $0x30] sm:$0xff]
    %v29 = vld [vmem:[%s0 + $0x38] sm:$0xff]
    %v30 = vld [vmem:[%s0 + $0x40] sm:$0xff]
    %v31 = vld [vmem:[%s0 + $0x48] sm:$0xff]
    %v32 = vld [vmem:[%s0 + $0x50] sm:$0xff]
    %v33 = vld [vmem:[%s0 + $0x58] sm:$0xff]
    %v34 = vld [vmem:[%s0 + $0x60] sm:$0xff]
    %v35 = vld [vmem:[%s0 + $0x68] sm:$0xff]
    %v36 = vld [vmem:[%s0 + $0x70] sm:$0xff]
    %v37 = vld [vmem:[%s0 + $0x78] sm:$0xff]
    %v38 = vld [vmem:[%s0 + $0x80] sm:$0xff]
    %v39 = vld [vmem:[%s0 + $0x88] sm:$0xff]
    %v40 = vld [vmem:[%s0 + $0x90] sm:$0xff]
    %v41 = vld [vmem:[%s0 + $0x98] sm:$0xff]
    %v42 = vld [vmem:[%s0 + $0xa0] sm:$0xff]
    %v43 = vld [vmem:[%s0 + $0xa8] sm:$0xff]
    %v44 = vld [vmem:[%s0 + $0xb0] sm:$0xff]
    %v45 = vld [vmem:[%s0 + $0xb8] sm:$0xff]
    %v46 = vld [vmem:[%s0 + $0xc0] sm:$0xff]
    %v47 = vld [vmem:[%s0 + $0xc8] sm:$0xff]
    %v48 = vld [vmem:[%s0 + $0xd0] sm:$0xff]
    %v49 = vld [vmem:[%s0 + $0xd8] sm:$0xff]
    %v50 = vld [vmem:[%s0 + $0xe0] sm:$0xff]
    %v51 = vld [vmem:[%s0 + $0xe8] sm:$0xff]
    %v52 = vld [vmem:[%s0 + $0xf0] sm:$0xff]
    %v53 = vld [vmem:[%s0 + $0xf8] sm:$0xff]
    %v54 = vld [vmem:[%s0 + $0x100] sm:$0xff]
    %v55 = vld [vmem:[%s0 + $0x108] sm:$0xff]
    %v56 = vld [vmem:[%s0 + $0x110] sm:$0xff]
    %v57 = vld [vmem:[%s0 + $0x118] sm:$0xff]
    %v58 = vld [vmem:[%s0 + $0x120] sm:$0xff]
    %v59 = vld [vmem:[%s0 + $0x128] sm:$0xff]
    %v60 = vld [vmem:[%s0 + $0x130] sm:$0xff]
    %v61 = vld [vmem:[%s0 + $0x138] sm:$0xff]
    %v62 = vld [vmem:[%s0 + $0x140] sm:$0xff]
    %v63 = vld [vmem:[%s0 + $0x148] sm:$0xff]
    %v64 = vld [vmem:[%s0 + $0x150] sm:$0xff]
    %v65 = vld [vmem:[%s0 + $0x158] sm:$0xff]
    %v66 = vld [vmem:[%s0 + $0x160] sm:$0xff]
    %v67 = vld [vmem:[%s0 + $0x168] sm:$0xff]
    %v68 = vld [vmem:[%s0 + $0x170] sm:$0xff]
    %v69 = vld [vmem:[%s0 + $0x178] sm:$0xff]
    %v70 = vld [vmem:[%s0 + $0x180] sm:$0xff]
    %v71 = vld [vmem:[%s0 + $0x188] sm:$0xff]
    %v72 = vld [vmem:[%s0 + $0x190] sm:$0xff]
    %v73 = vld [vmem:[%s0 + $0x198] sm:$0xff]
    %v74 = vld [vmem:[%s0 + $0x1a0] sm:$0xff]
    %v75 = vld [vmem:[%s0 + $0x1a8] sm:$0xff]
    %v76 = vld [vmem:[%s0 + $0x1b0] sm:$0xff]
    %v77 = vld [vmem:[%s0 + $0x1b8] sm:$0xff]
    %v78 = vld [vmem:[%s0 + $0x1c0] sm:$0xff]
    %v79 = vld [vmem:[%s0 + $0x1c8] sm:$0xff]
    %v80 = vld [vmem:[%s0 + $0x1d0] sm:$0xff]
    %v81 = vld [vmem:[%s0 + $0x1d8] sm:$0xff]
    %v82 = vld [vmem:[%s0 + $0x1e0] sm:$0xff]
    %v83 = vld [vmem:[%s0 + $0x1e8] sm:$0xff]
    %v84 = vld [vmem:[%s0 + $0x1f0] sm:$0xff]
    %v85 = vld [vmem:[%s0 + $0x1f8] sm:$0xff]
    %v86 = vld [vmem:[%s0 + $0x200] sm:$0xff]
    %v87 = vld [vmem:[%s0 + $0x208] sm:$0xff]
    %v88 = vld [vmem:[%s0 + $0x210] sm:$0xff]
    %v89 = vld [vmem:[%s0 + $0x218] sm:$0xff]
    %v90 = vld [vmem:[%s0 + $0x220] sm:$0xff]
    %v91 = vld [vmem:[%s0 + $0x228] sm:$0xff]
    %v92 = vld [vmem:[%s0 + $0x230] sm:$0xff]
    %v93 = vld [vmem:[%s0 + $0x238] sm:$0xff]
    %v94 = vld [vmem:[%s0 + $0x240] sm:$0xff]
    %v95 = vld [vmem:[%s0 + $0x248] sm:$0xff]
    %v96 = vld [vmem:[%s0 + $0x250] sm:$0xff]
    %v97 = vld [vmem:[%s0 + $0x258] sm:$0xff]
    %v98 = vld [vmem:[%s0 + $0x260] sm:$0xff]
    %v99 = vld [vmem:[%s0 + $0x268] sm:$0xff]
    %v100 = vld [vmem:[%s0 + $0x270] sm:$0xff]
    %v101 = vld [vmem:[%s0 + $0x278] sm:$0xff]
    %v102 = vld [vmem:[%s0 + $0x280] sm:$0xff]
    %v103 = vld [vmem:[%s0 + $0x288] sm:$0xff]
    %v104 = vld [vmem:[%s0 + $0x290] sm:$0xff]
    %v105 = vld [vmem:[%s0 + $0x298] sm:$0xff]
    %v106 = vld [vmem:[%s0 + $0x2a0] sm:$0xff]
    %v107 = vld [vmem:[%s0 + $0x2a8] sm:$0xff]
    %v108 = vld [vmem:[%s0 + $0x2b0] sm:$0xff]
    %v109 = vld [vmem:[%s0 + $0x2b8] sm:$0xff]
    %v110 = vld [vmem:[%s0 + $0x2c0] sm:$0xff]
    %v111 = vld [vmem:[%s0 + $0x2c8] sm:$0xff]
    %v112 = vld [vmem:[%s0 + $0x2d0] sm:$0xff]
    %v113 = vld [vmem:[%s0 + $0x2d8] sm:$0xff]
    %v114 = vld [vmem:[%s0 + $0x2e0] sm:$0xff]
    %v115 = vld [vmem:[%s0 + $0x2e8] sm:$0xff]
    %v116 = vld [vmem:[%s0 + $0x2f0] sm:$0xff]
    %v117 = vld [vmem:[%s0 + $0x2f8] sm:$0xff]
    %v118 = vld [vmem:[%s0 + $0x300] sm:$0xff]
    %v119 = vld [vmem:[%s0 + $0x308] sm:$0xff]
    %v120 = vld [vmem:[%s0 + $0x310] sm:$0xff]
    %v121 = vld [vmem:[%s0 + $0x318] sm:$0xff]
    %v122 = vld [vmem:[%s0 + $0x320] sm:$0xff]
    %v123 = vld [vmem:[%s0 + $0x328] sm:$0xff]
    %v124 = vld [vmem:[%s0 + $0x330] sm:$0xff]
    %v125 = vld [vmem:[%s0 + $0x338] sm:$0xff]
    %v126 = vld [vmem:[%s0 + $0x340] sm:$0xff]
    %v127 = vld [vmem:[%s0 + $0x348] sm:$0xff]
    %v128 = vld [vmem:[%s0 + $0x350] sm:$0xff]
    %v129 = vld [vmem:[%s0 + $0x358] sm:$0xff]
    %v130 = vld [vmem:[%s0 + $0x360] sm:$0xff]
    %v131 = vld [vmem:[%s0 + $0x368] sm:$0xff]
    %v132 = vld [vmem:[%s0 + $0x370] sm:$0xff]
    %v133 = vld [vmem:[%s0 + $0x378] sm:$0xff]
    %v134 = vld [vmem:[%s0 + $0x380] sm:$0xff]
    %v135 = vld [vmem:[%s0 + $0x388] sm:$0xff]
    %v136 = vld [vmem:[%s0 + $0x390] sm:$0xff]
    %v137 = vld [vmem:[%s0 + $0x398] sm:$0xff]
    %v138 = vld [vmem:[%s0 + $0x3a0] sm:$0xff]
    %v139 = vld [vmem:[%s0 + $0x3a8] sm:$0xff]
    %v140 = vld [vmem:[%s0 + $0x3b0] sm:$0xff]
    %v141 = vld [vmem:[%s0 + $0x3b8] sm:$0xff]
    %v142 = vld [vmem:[%s0 + $0x3c0] sm:$0xff]
    %v143 = vld [vmem:[%s0 + $0x3c8] sm:$0xff]
    %v144 = vld [vmem:[%s0 + $0x3d0] sm:$0xff]
    %v145 = vld [vmem:[%s0 + $0x3d8] sm:$0xff]
    %v146 = vld [vmem:[%s0 + $0x3e0] sm:$0xff]
    %v147 = vld [vmem:[%s0 + $0x3e8] sm:$0xff]
    %v148 = vld [vmem:[%s0 + $0x3f0] sm:$0xff]
    %v149 = vld [vmem:[%s0 + $0x3f8] sm:$0xff]
    %v150 = vld [vmem:[%s0 + $0x400] sm:$0xff]
    %v151 = vld [vmem:[%s0 + $0x408] sm:$0xff]
    %v152 = vld [vmem:[%s0 + $0x410] sm:$0xff]
    %v153 = vld [vmem:[%s0 + $0x418] sm:$0xff]
    %v154 = vld [vmem:[%s0 + $0x420] sm:$0xff]
    %v155 = vld [vmem:[%s0 + $0x428] sm:$0xff]
    %v156 = vld [vmem:[%s0 + $0x430] sm:$0xff]
    %v157 = vld [vmem:[%s0 + $0x438] sm:$0xff]
    %v158 = vld [vmem:[%s0 + $0x440] sm:$0xff]
    %v159 = vld [vmem:[%s0 + $0x448] sm:$0xff]
    %v160 = vld [vmem:[%s0 + $0x450] sm:$0xff]
    %v161 = vld [vmem:[%s0 + $0x458] sm:$0xff]
    %v162 = vld [vmem:[%s0 + $0x460] sm:$0xff]
    %v163 = vld [vmem:[%s0 + $0x468] sm:$0xff]
    %v164 = vld [vmem:[%s0 + $0x470] sm:$0xff]
    %v165 = vld [vmem:[%s0 + $0x478] sm:$0xff]
    %v166 = vld [vmem:[%s0 + $0x480] sm:$0xff]
    %v167 = vld [vmem:[%s0 + $0x488] sm:$0xff]
    %v168 = vld [vmem:[%s0 + $0x490] sm:$0xff]
    %v169 = vld [vmem:[%s0 + $0x498] sm:$0xff]
    %v170 = vld [vmem:[%s0 + $0x4a0] sm:$0xff]
    %v171 = vld [vmem:[%s0 + $0x4a8] sm:$0xff]
    %v172 = vld [vmem:[%s0 + $0x4b0] sm:$0xff]
    %v173 = vld [vmem:[%s0 + $0x4b8] sm:$0xff]
    %v174 = vld [vmem:[%s0 + $0x4c0] sm:$0xff]
    %v175 = vld [vmem:[%s0 + $0x4c8] sm:$0xff]
    %v176 = vld [vmem:[%s0 + $0x4d0] sm:$0xff]
    %v177 = vld [vmem:[%s0 + $0x4d8] sm:$0xff]
    %v178 = vld [vmem:[%s0 + $0x4e0] sm:$0xff]
    %v179 = vld [vmem:[%s0 + $0x4e8] sm:$0xff]
    %v180 = vld [vmem:[%s0 + $0x4f0] sm:$0xff]
    %v181 = vld [vmem:[%s0 + $0x4f8] sm:$0xff]
    %v182 = vld [vmem:[%s0 + $0x500] sm:$0xff]
    %v183 = vld [vmem:[%s0 + $0x508] sm:$0xff]
    %v184 = vld [vmem:[%s0 + $0x510] sm:$0xff]
    %v185 = vld [vmem:[%s0 + $0x518] sm:$0xff]
    %v186 = vld [vmem:[%s0 + $0x520] sm:$0xff]
    %v187 = vld [vmem:[%s0 + $0x528] sm:$0xff]
    %v188 = vld [vmem:[%s0 + $0x530] sm:$0xff]
    %v189 = vld [vmem:[%s0 + $0x538] sm:$0xff]
    %v190 = vld [vmem:[%s0 + $0x540] sm:$0xff]
    %v191 = vld [vmem:[%s0 + $0x548] sm:$0xff]
    %v192 = vld [vmem:[%s0 + $0x550] sm:$0xff]
    %v193 = vld [vmem:[%s0 + $0x558] sm:$0xff]
    %v194 = vld [vmem:[%s0 + $0x560] sm:$0xff]
    %v195 = vld [vmem:[%s0 + $0x568] sm:$0xff]
    %v196 = vld [vmem:[%s0 + $0x570] sm:$0xff]
    %v197 = vld [vmem:[%s0 + $0x578] sm:$0xff]
    %v198 = vld [vmem:[%s0 + $0x580] sm:$0xff]
    %v199 = vld [vmem:[%s0 + $0x588] sm:$0xff]
    %v200 = vld [vmem:[%s0 + $0x590] sm:$0xff]
    %v201 = vld [vmem:[%s0 + $0x598] sm:$0xff]
    %v202 = vld [vmem:[%s0 + $0x5a0] sm:$0xff]
    %v203 = vld [vmem:[%s0 + $0x5a8] sm:$0xff]
    %v204 = vld [vmem:[%s0 + $0x5b0] sm:$0xff]
    %v205 = vld [vmem:[%s0 + $0x5b8] sm:$0xff]
    %v206 = vld [vmem:[%s0 + $0x5c0] sm:$0xff]
    %v207 = vld [vmem:[%s0 + $0x5c8] sm:$0xff]
    %v208 = vld [vmem:[%s0 + $0x5d0] sm:$0xff]
    %v209 = vld [vmem:[%s0 + $0x5d8] sm:$0xff]
    %v210 = vld [vmem:[%s0 + $0x5e0] sm:$0xff]
    %v211 = vld [vmem:[%s0 + $0x5e8] sm:$0xff]
    %v212 = vld [vmem:[%s0 + $0x5f0] sm:$0xff]
    %v213 = vld [vmem:[%s0 + $0x5f8] sm:$0xff]
    %v214 = vld [vmem:[%s0 + $0x600] sm:$0xff]
    %v215 = vld [vmem:[%s0 + $0x608] sm:$0xff]
    %v216 = vld [vmem:[%s0 + $0x610] sm:$0xff]
    %v217 = vld [vmem:[%s0 + $0x618] sm:$0xff]
    %v218 = vld [vmem:[%s0 + $0x620] sm:$0xff]
    %v219 = vld [vmem:[%s0 + $0x628] sm:$0xff]
    %v220 = vld [vmem:[%s0 + $0x630] sm:$0xff]
    %v221 = vld [vmem:[%s0 + $0x638] sm:$0xff]
    %v222 = vld [vmem:[%s0 + $0x640] sm:$0xff]
    %v223 = vld [vmem:[%s0 + $0x648] sm:$0xff]
    %v224 = vld [vmem:[%s0 + $0x650] sm:$0xff]
    %v225 = vld [vmem:[%s0 + $0x658] sm:$0xff]
    %v226 = vld [vmem:[%s0 + $0x660] sm:$0xff]
    %v227 = vld [vmem:[%s0 + $0x668] sm:$0xff]
    %v228 = vld [vmem:[%s0 + $0x670] sm:$0xff]
    %v229 = vld [vmem:[%s0 + $0x678] sm:$0xff]
    %v230 = vld [vmem:[%s0 + $0x680] sm:$0xff]
    %v231 = vld [vmem:[%s0 + $0x688] sm:$0xff]
    %v232 = vld [vmem:[%s0 + $0x690] sm:$0xff]
    %v233 = vld [vmem:[%s0 + $0x698] sm:$0xff]
    %v234 = vld [vmem:[%s0 + $0x6a0] sm:$0xff]
    %v235 = vld [vmem:[%s0 + $0x6a8] sm:$0xff]
    %v236 = vld [vmem:[%s0 + $0x6b0] sm:$0xff]
    %v237 = vld [vmem:[%s0 + $0x6b8] sm:$0xff]
    %v238 = vld [vmem:[%s0 + $0x6c0] sm:$0xff]
    %v239 = vld [vmem:[%s0 + $0x6c8] sm:$0xff]
    %v240 = vld [vmem:[%s0 + $0x6d0] sm:$0xff]
    %v241 = vld [vmem:[%s0 + $0x6d8] sm:$0xff]
    %v242 = vld [vmem:[%s0 + $0x6e0] sm:$0xff]
    %v243 = vld [vmem:[%s0 + $0x6e8] sm:$0xff]
    %v244 = vld [vmem:[%s0 + $0x6f0] sm:$0xff]
    %v245 = vld [vmem:[%s0 + $0x6f8] sm:$0xff]
    %v246 = vld [vmem:[%s0 + $0x700] sm:$0xff]
    %v247 = vld [vmem:[%s0 + $0x708] sm:$0xff]
    %v248 = vld [vmem:[%s0 + $0x710] sm:$0xff]
    %v249 = vld [vmem:[%s0 + $0x718] sm:$0xff]
    %v250 = vld [vmem:[%s0 + $0x720] sm:$0xff]
    %v251 = vld [vmem:[%s0 + $0x728] sm:$0xff]
    %v252 = vld [vmem:[%s0 + $0x730] sm:$0xff]
    %v253 = vld [vmem:[%s0 + $0x738] sm:$0xff]
    %v254 = vld [vmem:[%s0 + $0x740] sm:$0xff]
    %v255 = vld [vmem:[%s0 + $0x748] sm:$0xff]
    %v256 = vld [vmem:[%s0 + $0x750] sm:$0xff]
    %v257 = vld [vmem:[%s0 + $0x758] sm:$0xff]
    %v258 = vld [vmem:[%s0 + $0x760] sm:$0xff]
    %v259 = vld [vmem:[%s0 + $0x768] sm:$0xff]
    %v260 = vld [vmem:[%s0 + $0x770] sm:$0xff]
    %v261 = vld [vmem:[%s0 + $0x778] sm:$0xff]
    %v262 = vld [vmem:[%s0 + $0x780] sm:$0xff]
    %v263 = vld [vmem:[%s0 + $0x788] sm:$0xff]
    %v264 = vld [vmem:[%s0 + $0x790] sm:$0xff]
    %v265 = vld [vmem:[%s0 + $0x798] sm:$0xff]
    %v266 = vld [vmem:[%s0 + $0x7a0] sm:$0xff]
    %v267 = vld [vmem:[%s0 + $0x7a8] sm:$0xff]
    %v268 = vld [vmem:[%s0 + $0x7b0] sm:$0xff]
    %v269 = vld [vmem:[%s0 + $0x7b8] sm:$0xff]
    %v270 = vld [vmem:[%s0 + $0x7c0] sm:$0xff]
    %v271 = vld [vmem:[%s0 + $0x7c8] sm:$0xff]
    %v272 = vld [vmem:[%s0 + $0x7d0] sm:$0xff]
    %v273 = vld [vmem:[%s0 + $0x7d8] sm:$0xff]
    %v274 = vld [vmem:[%s0 + $0x7e0] sm:$0xff]
    %v275 = vld [vmem:[%s0 + $0x7e8] sm:$0xff]
    %v276 = vld [vmem:[%s0 + $0x7f0] sm:$0xff]
    %v277 = vld [vmem:[%s0 + $0x7f8] sm:$0xff]
    %v278 = vld [vmem:[%s2] sm:$0x1f]
    %280 = vset.pattern.permute.xlu0 0
    %281 = vperm.xlu0 %280, %v278
    %v282 = vpop.permute.xlu0 %281
    %vm284 = vcmask 80896
    %v286 = vsel %vm284, %v21, 0
    %v289 = vsel %vm284, %v22, 0
    %v292 = vsel %vm284, %v23, 0
    %v295 = vsel %vm284, %v24, 0
    %v298 = vsel %vm284, %v25, 0
    %v301 = vsel %vm284, %v26, 0
    %v304 = vsel %vm284, %v27, 0
    %v307 = vsel %vm284, %v28, 0
    %v310 = vsel %vm284, %v29, 0
    %v313 = vsel %vm284, %v30, 0
    %v316 = vsel %vm284, %v31, 0
    %v319 = vsel %vm284, %v32, 0
    %v322 = vsel %vm284, %v33, 0
    %v325 = vsel %vm284, %v34, 0
    %v328 = vsel %vm284, %v35, 0
    %v331 = vsel %vm284, %v36, 0
    %v334 = vsel %vm284, %v37, 0
    %v337 = vsel %vm284, %v38, 0
    %v340 = vsel %vm284, %v39, 0
    %v343 = vsel %vm284, %v40, 0
    %v346 = vsel %vm284, %v41, 0
    %v349 = vsel %vm284, %v42, 0
    %v352 = vsel %vm284, %v43, 0
    %v355 = vsel %vm284, %v44, 0
    %v358 = vsel %vm284, %v45, 0
    %v361 = vsel %vm284, %v46, 0
    %v364 = vsel %vm284, %v47, 0
    %v367 = vsel %vm284, %v48, 0
    %v370 = vsel %vm284, %v49, 0
    %v373 = vsel %vm284, %v50, 0
    %v376 = vsel %vm284, %v51, 0
    %v379 = vsel %vm284, %v52, 0
    %v382 = vsel %vm284, %v53, 0
    %v385 = vsel %vm284, %v54, 0
    %v388 = vsel %vm284, %v55, 0
    %v391 = vsel %vm284, %v56, 0
    %v394 = vsel %vm284, %v57, 0
    %v397 = vsel %vm284, %v58, 0
    %v400 = vsel %vm284, %v59, 0
    %v403 = vsel %vm284, %v60, 0
    %v406 = vsel %vm284, %v61, 0
    %v409 = vsel %vm284, %v62, 0
    %v412 = vsel %vm284, %v63, 0
    %v415 = vsel %vm284, %v64, 0
    %v418 = vsel %vm284, %v65, 0
    %v421 = vsel %vm284, %v66, 0
    %v424 = vsel %vm284, %v67, 0
    %v427 = vsel %vm284, %v68, 0
    %v430 = vsel %vm284, %v69, 0
    %v433 = vsel %vm284, %v70, 0
    %v436 = vsel %vm284, %v71, 0
    %v439 = vsel %vm284, %v72, 0
    %v442 = vsel %vm284, %v73, 0
    %v445 = vsel %vm284, %v74, 0
    %v448 = vsel %vm284, %v75, 0
    %v451 = vsel %vm284, %v76, 0
    %v454 = vsel %vm284, %v77, 0
    %v457 = vsel %vm284, %v78, 0
    %v460 = vsel %vm284, %v79, 0
    %v463 = vsel %vm284, %v80, 0
    %v466 = vsel %vm284, %v81, 0
    %v469 = vsel %vm284, %v82, 0
    %v472 = vsel %vm284, %v83, 0
    %v475 = vsel %vm284, %v84, 0
    %v478 = vsel %vm284, %v85, 0
    %v481 = vsel %vm284, %v86, 0
    %v484 = vsel %vm284, %v87, 0
    %v487 = vsel %vm284, %v88, 0
    %v490 = vsel %vm284, %v89, 0
    %v493 = vsel %vm284, %v90, 0
    %v496 = vsel %vm284, %v91, 0
    %v499 = vsel %vm284, %v92, 0
    %v502 = vsel %vm284, %v93, 0
    %v505 = vsel %vm284, %v94, 0
    %v508 = vsel %vm284, %v95, 0
    %v511 = vsel %vm284, %v96, 0
    %v514 = vsel %vm284, %v97, 0
    %v517 = vsel %vm284, %v98, 0
    %v520 = vsel %vm284, %v99, 0
    %v523 = vsel %vm284, %v100, 0
    %v526 = vsel %vm284, %v101, 0
    %v529 = vsel %vm284, %v102, 0
    %v532 = vsel %vm284, %v103, 0
    %v535 = vsel %vm284, %v104, 0
    %v538 = vsel %vm284, %v105, 0
    %v541 = vsel %vm284, %v106, 0
    %v544 = vsel %vm284, %v107, 0
    %v547 = vsel %vm284, %v108, 0
    %v550 = vsel %vm284, %v109, 0
    %v553 = vsel %vm284, %v110, 0
    %v556 = vsel %vm284, %v111, 0
    %v559 = vsel %vm284, %v112, 0
    %v562 = vsel %vm284, %v113, 0
    %v565 = vsel %vm284, %v114, 0
    %v568 = vsel %vm284, %v115, 0
    %v571 = vsel %vm284, %v116, 0
    %v574 = vsel %vm284, %v117, 0
    %v577 = vsel %vm284, %v118, 0
    %v580 = vsel %vm284, %v119, 0
    %v583 = vsel %vm284, %v120, 0
    %v586 = vsel %vm284, %v121, 0
    %v589 = vsel %vm284, %v122, 0
    %v592 = vsel %vm284, %v123, 0
    %v595 = vsel %vm284, %v124, 0
    %v598 = vsel %vm284, %v125, 0
    %v601 = vsel %vm284, %v126, 0
    %v604 = vsel %vm284, %v127, 0
    %v607 = vsel %vm284, %v128, 0
    %v610 = vsel %vm284, %v129, 0
    %v613 = vsel %vm284, %v130, 0
    %v616 = vsel %vm284, %v131, 0
    %v619 = vsel %vm284, %v132, 0
    %v622 = vsel %vm284, %v133, 0
    %v625 = vsel %vm284, %v134, 0
    %v628 = vsel %vm284, %v135, 0
    %v631 = vsel %vm284, %v136, 0
    %v634 = vsel %vm284, %v137, 0
    %v637 = vsel %vm284, %v138, 0
    %v640 = vsel %vm284, %v139, 0
    %v643 = vsel %vm284, %v140, 0
    %v646 = vsel %vm284, %v141, 0
    %v649 = vsel %vm284, %v142, 0
    %v652 = vsel %vm284, %v143, 0
    %v655 = vsel %vm284, %v144, 0
    %v658 = vsel %vm284, %v145, 0
    %v661 = vsel %vm284, %v146, 0
    %v664 = vsel %vm284, %v147, 0
    %v667 = vsel %vm284, %v148, 0
    %v670 = vsel %vm284, %v149, 0
    %v673 = vsel %vm284, %v150, 0
    %v676 = vsel %vm284, %v151, 0
    %v679 = vsel %vm284, %v152, 0
    %v682 = vsel %vm284, %v153, 0
    %v685 = vsel %vm284, %v154, 0
    %v688 = vsel %vm284, %v155, 0
    %v691 = vsel %vm284, %v156, 0
    %v694 = vsel %vm284, %v157, 0
    %v697 = vsel %vm284, %v158, 0
    %v700 = vsel %vm284, %v159, 0
    %v703 = vsel %vm284, %v160, 0
    %v706 = vsel %vm284, %v161, 0
    %v709 = vsel %vm284, %v162, 0
    %v712 = vsel %vm284, %v163, 0
    %v715 = vsel %vm284, %v164, 0
    %v718 = vsel %vm284, %v165, 0
    %v721 = vsel %vm284, %v166, 0
    %v724 = vsel %vm284, %v167, 0
    %v727 = vsel %vm284, %v168, 0
    %v730 = vsel %vm284, %v169, 0
    %v733 = vsel %vm284, %v170, 0
    %v736 = vsel %vm284, %v171, 0
    %v739 = vsel %vm284, %v172, 0
    %v742 = vsel %vm284, %v173, 0
    %v745 = vsel %vm284, %v174, 0
    %v748 = vsel %vm284, %v175, 0
    %v751 = vsel %vm284, %v176, 0
    %v754 = vsel %vm284, %v177, 0
    %v757 = vsel %vm284, %v178, 0
    %v760 = vsel %vm284, %v179, 0
    %v763 = vsel %vm284, %v180, 0
    %v766 = vsel %vm284, %v181, 0
    %v769 = vsel %vm284, %v182, 0
    %v772 = vsel %vm284, %v183, 0
    %v775 = vsel %vm284, %v184, 0
    %v778 = vsel %vm284, %v185, 0
    %v781 = vsel %vm284, %v186, 0
    %v784 = vsel %vm284, %v187, 0
    %v787 = vsel %vm284, %v188, 0
    %v790 = vsel %vm284, %v189, 0
    %v793 = vsel %vm284, %v190, 0
    %v796 = vsel %vm284, %v191, 0
    %v799 = vsel %vm284, %v192, 0
    %v802 = vsel %vm284, %v193, 0
    %v805 = vsel %vm284, %v194, 0
    %v808 = vsel %vm284, %v195, 0
    %v811 = vsel %vm284, %v196, 0
    %v814 = vsel %vm284, %v197, 0
    %v817 = vsel %vm284, %v198, 0
    %v820 = vsel %vm284, %v199, 0
    %v823 = vsel %vm284, %v200, 0
    %v826 = vsel %vm284, %v201, 0
    %v829 = vsel %vm284, %v202, 0
    %v832 = vsel %vm284, %v203, 0
    %v835 = vsel %vm284, %v204, 0
    %v838 = vsel %vm284, %v205, 0
    %v841 = vsel %vm284, %v206, 0
    %v844 = vsel %vm284, %v207, 0
    %v847 = vsel %vm284, %v208, 0
    %v850 = vsel %vm284, %v209, 0
    %v853 = vsel %vm284, %v210, 0
    %v856 = vsel %vm284, %v211, 0
    %v859 = vsel %vm284, %v212, 0
    %v862 = vsel %vm284, %v213, 0
    %v865 = vsel %vm284, %v214, 0
    %v868 = vsel %vm284, %v215, 0
    %v871 = vsel %vm284, %v216, 0
    %v874 = vsel %vm284, %v217, 0
    %v877 = vsel %vm284, %v218, 0
    %v880 = vsel %vm284, %v219, 0
    %v883 = vsel %vm284, %v220, 0
    %v886 = vsel %vm284, %v221, 0
    %v889 = vsel %vm284, %v222, 0
    %v892 = vsel %vm284, %v223, 0
    %v895 = vsel %vm284, %v224, 0
    %v898 = vsel %vm284, %v225, 0
    %v901 = vsel %vm284, %v226, 0
    %v904 = vsel %vm284, %v227, 0
    %v907 = vsel %vm284, %v228, 0
    %v910 = vsel %vm284, %v229, 0
    %v913 = vsel %vm284, %v230, 0
    %v916 = vsel %vm284, %v231, 0
    %v919 = vsel %vm284, %v232, 0
    %v922 = vsel %vm284, %v233, 0
    %v925 = vsel %vm284, %v234, 0
    %v928 = vsel %vm284, %v235, 0
    %v931 = vsel %vm284, %v236, 0
    %v934 = vsel %vm284, %v237, 0
    %v937 = vsel %vm284, %v238, 0
    %v940 = vsel %vm284, %v239, 0
    %v943 = vsel %vm284, %v240, 0
    %v946 = vsel %vm284, %v241, 0
    %v949 = vsel %vm284, %v242, 0
    %v952 = vsel %vm284, %v243, 0
    %v955 = vsel %vm284, %v244, 0
    %v958 = vsel %vm284, %v245, 0
    %v961 = vsel %vm284, %v246, 0
    %v964 = vsel %vm284, %v247, 0
    %v967 = vsel %vm284, %v248, 0
    %v970 = vsel %vm284, %v249, 0
    %v973 = vsel %vm284, %v250, 0
    %v976 = vsel %vm284, %v251, 0
    %v979 = vsel %vm284, %v252, 0
    %v982 = vsel %vm284, %v253, 0
    %v985 = vsel %vm284, %v254, 0
    %v988 = vsel %vm284, %v255, 0
    %v991 = vsel %vm284, %v256, 0
    %v994 = vsel %vm284, %v257, 0
    %v997 = vsel %vm284, %v258, 0
    %v1000 = vsel %vm284, %v259, 0
    %v1003 = vsel %vm284, %v260, 0
    %v1006 = vsel %vm284, %v261, 0
    %v1009 = vsel %vm284, %v262, 0
    %v1012 = vsel %vm284, %v263, 0
    %v1015 = vsel %vm284, %v264, 0
    %v1018 = vsel %vm284, %v265, 0
    %v1021 = vsel %vm284, %v266, 0
    %v1024 = vsel %vm284, %v267, 0
    %v1027 = vsel %vm284, %v268, 0
    %v1030 = vsel %vm284, %v269, 0
    %v1033 = vsel %vm284, %v270, 0
    %v1036 = vsel %vm284, %v271, 0
    %v1039 = vsel %vm284, %v272, 0
    %v1042 = vsel %vm284, %v273, 0
    %v1045 = vsel %vm284, %v274, 0
    %v1048 = vsel %vm284, %v275, 0
    %v1051 = vsel %vm284, %v276, 0
    %v1054 = vsel %vm284, %v277, 0
    %1056 = vmatpush.xpose.msra.mxu0 %v334
    %1057 = vmatpush.xpose.msra.mxu0 %v331
    %1058 = vmatpush.xpose.msra.mxu0 %v328
    %1059 = vmatpush.xpose.msra.mxu0 %v325
    %1060 = vmatpush.xpose.msra.mxu0 %v322
    %1061 = vmatpush.xpose.msra.mxu0 %v319
    %1062 = vmatpush.xpose.msra.mxu0 %v316
    %1063 = vmatpush.xpose.msra.mxu0 %v313
    %1064 = vmatpush.xpose.msra.mxu0 %v310
    %1065 = vmatpush.xpose.msra.mxu0 %v307
    %1066 = vmatpush.xpose.msra.mxu0 %v304
    %1067 = vmatpush.xpose.msra.mxu0 %v301
    %1068 = vmatpush.xpose.msra.mxu0 %v298
    %1069 = vmatpush.xpose.msra.mxu0 %v295
    %1070 = vmatpush.xpose.msra.mxu0 %v292
    %1071 = vmatpush.xpose.msra.mxu0 %v289
    %1072 = vmatmul.f32.gmra.mxu0 %v286
    %v1073 = vpop.f32.mrf.mxu0
    %v1074 = vadd.f32 %v282, %v1073
    %1075 = vdwg.mxu0
    %1076 = vmatpush.xpose.msra.mxu0 %v382
    %1077 = vmatpush.xpose.msra.mxu0 %v379
    %1078 = vmatpush.xpose.msra.mxu0 %v376
    %1079 = vmatpush.xpose.msra.mxu0 %v373
    %1080 = vmatpush.xpose.msra.mxu0 %v370
    %1081 = vmatpush.xpose.msra.mxu0 %v367
    %1082 = vmatpush.xpose.msra.mxu0 %v364
    %1083 = vmatpush.xpose.msra.mxu0 %v361
    %1084 = vmatpush.xpose.msra.mxu0 %v358
    %1085 = vmatpush.xpose.msra.mxu0 %v355
    %1086 = vmatpush.xpose.msra.mxu0 %v352
    %1087 = vmatpush.xpose.msra.mxu0 %v349
    %1088 = vmatpush.xpose.msra.mxu0 %v346
    %1089 = vmatpush.xpose.msra.mxu0 %v343
    %1090 = vmatpush.xpose.msra.mxu0 %v340
    %1091 = vmatpush.xpose.msra.mxu0 %v337
    %1092 = vmatmul.f32.gmra.mxu0 %v286
    %v1093 = vpop.f32.mrf.mxu0
    %v1094 = vadd.f32 %v282, %v1093
    %1095 = vdwg.mxu0
    %1096 = vmatpush.xpose.msra.mxu0 %v430
    %1097 = vmatpush.xpose.msra.mxu0 %v427
    %1098 = vmatpush.xpose.msra.mxu0 %v424
    %1099 = vmatpush.xpose.msra.mxu0 %v421
    %1100 = vmatpush.xpose.msra.mxu0 %v418
    %1101 = vmatpush.xpose.msra.mxu0 %v415
    %1102 = vmatpush.xpose.msra.mxu0 %v412
    %1103 = vmatpush.xpose.msra.mxu0 %v409
    %1104 = vmatpush.xpose.msra.mxu0 %v406
    %1105 = vmatpush.xpose.msra.mxu0 %v403
    %1106 = vmatpush.xpose.msra.mxu0 %v400
    %1107 = vmatpush.xpose.msra.mxu0 %v397
    %1108 = vmatpush.xpose.msra.mxu0 %v394
    %1109 = vmatpush.xpose.msra.mxu0 %v391
    %1110 = vmatpush.xpose.msra.mxu0 %v388
    %1111 = vmatpush.xpose.msra.mxu0 %v385
    %1112 = vmatmul.f32.gmra.mxu0 %v286
    %v1113 = vpop.f32.mrf.mxu0
    %v1114 = vadd.f32 %v282, %v1113
    %1115 = vdwg.mxu0
    %1116 = vmatpush.xpose.msra.mxu0 %v478
    %1117 = vmatpush.xpose.msra.mxu0 %v475
    %1118 = vmatpush.xpose.msra.mxu0 %v472
    %1119 = vmatpush.xpose.msra.mxu0 %v469
    %1120 = vmatpush.xpose.msra.mxu0 %v466
    %1121 = vmatpush.xpose.msra.mxu0 %v463
    %1122 = vmatpush.xpose.msra.mxu0 %v460
    %1123 = vmatpush.xpose.msra.mxu0 %v457
    %1124 = vmatpush.xpose.msra.mxu0 %v454
    %1125 = vmatpush.xpose.msra.mxu0 %v451
    %1126 = vmatpush.xpose.msra.mxu0 %v448
    %1127 = vmatpush.xpose.msra.mxu0 %v445
    %1128 = vmatpush.xpose.msra.mxu0 %v442
    %1129 = vmatpush.xpose.msra.mxu0 %v439
    %1130 = vmatpush.xpose.msra.mxu0 %v436
    %1131 = vmatpush.xpose.msra.mxu0 %v433
    %1132 = vmatmul.f32.gmra.mxu0 %v286
    %v1133 = vpop.f32.mrf.mxu0
    %v1134 = vadd.f32 %v282, %v1133
    %1135 = vdwg.mxu0
    %1136 = vmatpush.xpose.msra.mxu0 %v526
    %1137 = vmatpush.xpose.msra.mxu0 %v523
    %1138 = vmatpush.xpose.msra.mxu0 %v520
    %1139 = vmatpush.xpose.msra.mxu0 %v517
    %1140 = vmatpush.xpose.msra.mxu0 %v514
    %1141 = vmatpush.xpose.msra.mxu0 %v511
    %1142 = vmatpush.xpose.msra.mxu0 %v508
    %1143 = vmatpush.xpose.msra.mxu0 %v505
    %1144 = vmatpush.xpose.msra.mxu0 %v502
    %1145 = vmatpush.xpose.msra.mxu0 %v499
    %1146 = vmatpush.xpose.msra.mxu0 %v496
    %1147 = vmatpush.xpose.msra.mxu0 %v493
    %1148 = vmatpush.xpose.msra.mxu0 %v490
    %1149 = vmatpush.xpose.msra.mxu0 %v487
    %1150 = vmatpush.xpose.msra.mxu0 %v484
    %1151 = vmatpush.xpose.msra.mxu0 %v481
    %1152 = vmatmul.f32.gmra.mxu0 %v286
    %v1153 = vpop.f32.mrf.mxu0
    %v1154 = vadd.f32 %v282, %v1153
    %1155 = vdwg.mxu0
    %1156 = vmatpush.xpose.msra.mxu0 %v574
    %1157 = vmatpush.xpose.msra.mxu0 %v571
    %1158 = vmatpush.xpose.msra.mxu0 %v568
    %1159 = vmatpush.xpose.msra.mxu0 %v565
    %1160 = vmatpush.xpose.msra.mxu0 %v562
    %1161 = vmatpush.xpose.msra.mxu0 %v559
    %1162 = vmatpush.xpose.msra.mxu0 %v556
    %1163 = vmatpush.xpose.msra.mxu0 %v553
    %1164 = vmatpush.xpose.msra.mxu0 %v550
    %1165 = vmatpush.xpose.msra.mxu0 %v547
    %1166 = vmatpush.xpose.msra.mxu0 %v544
    %1167 = vmatpush.xpose.msra.mxu0 %v541
    %1168 = vmatpush.xpose.msra.mxu0 %v538
    %1169 = vmatpush.xpose.msra.mxu0 %v535
    %1170 = vmatpush.xpose.msra.mxu0 %v532
    %1171 = vmatpush.xpose.msra.mxu0 %v529
    %1172 = vmatmul.f32.gmra.mxu0 %v286
    %v1173 = vpop.f32.mrf.mxu0
    %v1174 = vadd.f32 %v282, %v1173
    %1175 = vdwg.mxu0
    %1176 = vmatpush.xpose.msra.mxu0 %v622
    %1177 = vmatpush.xpose.msra.mxu0 %v619
    %1178 = vmatpush.xpose.msra.mxu0 %v616
    %1179 = vmatpush.xpose.msra.mxu0 %v613
    %1180 = vmatpush.xpose.msra.mxu0 %v610
    %1181 = vmatpush.xpose.msra.mxu0 %v607
    %1182 = vmatpush.xpose.msra.mxu0 %v604
    %1183 = vmatpush.xpose.msra.mxu0 %v601
    %1184 = vmatpush.xpose.msra.mxu0 %v598
    %1185 = vmatpush.xpose.msra.mxu0 %v595
    %1186 = vmatpush.xpose.msra.mxu0 %v592
    %1187 = vmatpush.xpose.msra.mxu0 %v589
    %1188 = vmatpush.xpose.msra.mxu0 %v586
    %1189 = vmatpush.xpose.msra.mxu0 %v583
    %1190 = vmatpush.xpose.msra.mxu0 %v580
    %1191 = vmatpush.xpose.msra.mxu0 %v577
    %1192 = vmatmul.f32.gmra.mxu0 %v286
    %v1193 = vpop.f32.mrf.mxu0
    %v1194 = vadd.f32 %v282, %v1193
    %1195 = vdwg.mxu0
    %1196 = vmatpush.xpose.msra.mxu0 %v670
    %1197 = vmatpush.xpose.msra.mxu0 %v667
    %1198 = vmatpush.xpose.msra.mxu0 %v664
    %1199 = vmatpush.xpose.msra.mxu0 %v661
    %1200 = vmatpush.xpose.msra.mxu0 %v658
    %1201 = vmatpush.xpose.msra.mxu0 %v655
    %1202 = vmatpush.xpose.msra.mxu0 %v652
    %1203 = vmatpush.xpose.msra.mxu0 %v649
    %1204 = vmatpush.xpose.msra.mxu0 %v646
    %1205 = vmatpush.xpose.msra.mxu0 %v643
    %1206 = vmatpush.xpose.msra.mxu0 %v640
    %1207 = vmatpush.xpose.msra.mxu0 %v637
    %1208 = vmatpush.xpose.msra.mxu0 %v634
    %1209 = vmatpush.xpose.msra.mxu0 %v631
    %1210 = vmatpush.xpose.msra.mxu0 %v628
    %1211 = vmatpush.xpose.msra.mxu0 %v625
    %1212 = vmatmul.f32.gmra.mxu0 %v286
    %v1213 = vpop.f32.mrf.mxu0
    %v1214 = vadd.f32 %v282, %v1213
    %1215 = vdwg.mxu0
    %1216 = vmatpush.xpose.msra.mxu0 %v718
    %1217 = vmatpush.xpose.msra.mxu0 %v715
    %1218 = vmatpush.xpose.msra.mxu0 %v712
    %1219 = vmatpush.xpose.msra.mxu0 %v709
    %1220 = vmatpush.xpose.msra.mxu0 %v706
    %1221 = vmatpush.xpose.msra.mxu0 %v703
    %1222 = vmatpush.xpose.msra.mxu0 %v700
    %1223 = vmatpush.xpose.msra.mxu0 %v697
    %1224 = vmatpush.xpose.msra.mxu0 %v694
    %1225 = vmatpush.xpose.msra.mxu0 %v691
    %1226 = vmatpush.xpose.msra.mxu0 %v688
    %1227 = vmatpush.xpose.msra.mxu0 %v685
    %1228 = vmatpush.xpose.msra.mxu0 %v682
    %1229 = vmatpush.xpose.msra.mxu0 %v679
    %1230 = vmatpush.xpose.msra.mxu0 %v676
    %1231 = vmatpush.xpose.msra.mxu0 %v673
    %1232 = vmatmul.f32.gmra.mxu0 %v286
    %v1233 = vpop.f32.mrf.mxu0
    %v1234 = vadd.f32 %v282, %v1233
    %1235 = vdwg.mxu0
    %1236 = vmatpush.xpose.msra.mxu0 %v766
    %1237 = vmatpush.xpose.msra.mxu0 %v763
    %1238 = vmatpush.xpose.msra.mxu0 %v760
    %1239 = vmatpush.xpose.msra.mxu0 %v757
    %1240 = vmatpush.xpose.msra.mxu0 %v754
    %1241 = vmatpush.xpose.msra.mxu0 %v751
    %1242 = vmatpush.xpose.msra.mxu0 %v748
    %1243 = vmatpush.xpose.msra.mxu0 %v745
    %1244 = vmatpush.xpose.msra.mxu0 %v742
    %1245 = vmatpush.xpose.msra.mxu0 %v739
    %1246 = vmatpush.xpose.msra.mxu0 %v736
    %1247 = vmatpush.xpose.msra.mxu0 %v733
    %1248 = vmatpush.xpose.msra.mxu0 %v730
    %1249 = vmatpush.xpose.msra.mxu0 %v727
    %1250 = vmatpush.xpose.msra.mxu0 %v724
    %1251 = vmatpush.xpose.msra.mxu0 %v721
    %1252 = vmatmul.f32.gmra.mxu0 %v286
    %v1253 = vpop.f32.mrf.mxu0
    %v1254 = vadd.f32 %v282, %v1253
    %1255 = vdwg.mxu0
    %1256 = vmatpush.xpose.msra.mxu0 %v814
    %1257 = vmatpush.xpose.msra.mxu0 %v811
    %1258 = vmatpush.xpose.msra.mxu0 %v808
    %1259 = vmatpush.xpose.msra.mxu0 %v805
    %1260 = vmatpush.xpose.msra.mxu0 %v802
    %1261 = vmatpush.xpose.msra.mxu0 %v799
    %1262 = vmatpush.xpose.msra.mxu0 %v796
    %1263 = vmatpush.xpose.msra.mxu0 %v793
    %1264 = vmatpush.xpose.msra.mxu0 %v790
    %1265 = vmatpush.xpose.msra.mxu0 %v787
    %1266 = vmatpush.xpose.msra.mxu0 %v784
    %1267 = vmatpush.xpose.msra.mxu0 %v781
    %1268 = vmatpush.xpose.msra.mxu0 %v778
    %1269 = vmatpush.xpose.msra.mxu0 %v775
    %1270 = vmatpush.xpose.msra.mxu0 %v772
    %1271 = vmatpush.xpose.msra.mxu0 %v769
    %1272 = vmatmul.f32.gmra.mxu0 %v286
    %v1273 = vpop.f32.mrf.mxu0
    %v1274 = vadd.f32 %v282, %v1273
    %1275 = vdwg.mxu0
    %1276 = vmatpush.xpose.msra.mxu0 %v862
    %1277 = vmatpush.xpose.msra.mxu0 %v859
    %1278 = vmatpush.xpose.msra.mxu0 %v856
    %1279 = vmatpush.xpose.msra.mxu0 %v853
    %1280 = vmatpush.xpose.msra.mxu0 %v850
    %1281 = vmatpush.xpose.msra.mxu0 %v847
    %1282 = vmatpush.xpose.msra.mxu0 %v844
    %1283 = vmatpush.xpose.msra.mxu0 %v841
    %1284 = vmatpush.xpose.msra.mxu0 %v838
    %1285 = vmatpush.xpose.msra.mxu0 %v835
    %1286 = vmatpush.xpose.msra.mxu0 %v832
    %1287 = vmatpush.xpose.msra.mxu0 %v829
    %1288 = vmatpush.xpose.msra.mxu0 %v826
    %1289 = vmatpush.xpose.msra.mxu0 %v823
    %1290 = vmatpush.xpose.msra.mxu0 %v820
    %1291 = vmatpush.xpose.msra.mxu0 %v817
    %1292 = vmatmul.f32.gmra.mxu0 %v286
    %v1293 = vpop.f32.mrf.mxu0
    %v1294 = vadd.f32 %v282, %v1293
    %1295 = vdwg.mxu0
    %1296 = vmatpush.xpose.msra.mxu0 %v910
    %1297 = vmatpush.xpose.msra.mxu0 %v907
    %1298 = vmatpush.xpose.msra.mxu0 %v904
    %1299 = vmatpush.xpose.msra.mxu0 %v901
    %1300 = vmatpush.xpose.msra.mxu0 %v898
    %1301 = vmatpush.xpose.msra.mxu0 %v895
    %1302 = vmatpush.xpose.msra.mxu0 %v892
    %1303 = vmatpush.xpose.msra.mxu0 %v889
    %1304 = vmatpush.xpose.msra.mxu0 %v886
    %1305 = vmatpush.xpose.msra.mxu0 %v883
    %1306 = vmatpush.xpose.msra.mxu0 %v880
    %1307 = vmatpush.xpose.msra.mxu0 %v877
    %1308 = vmatpush.xpose.msra.mxu0 %v874
    %1309 = vmatpush.xpose.msra.mxu0 %v871
    %1310 = vmatpush.xpose.msra.mxu0 %v868
    %1311 = vmatpush.xpose.msra.mxu0 %v865
    %1312 = vmatmul.f32.gmra.mxu0 %v286
    %v1313 = vpop.f32.mrf.mxu0
    %v1314 = vadd.f32 %v282, %v1313
    %1315 = vdwg.mxu0
    %1316 = vmatpush.xpose.msra.mxu0 %v958
    %1317 = vmatpush.xpose.msra.mxu0 %v955
    %1318 = vmatpush.xpose.msra.mxu0 %v952
    %1319 = vmatpush.xpose.msra.mxu0 %v949
    %1320 = vmatpush.xpose.msra.mxu0 %v946
    %1321 = vmatpush.xpose.msra.mxu0 %v943
    %1322 = vmatpush.xpose.msra.mxu0 %v940
    %1323 = vmatpush.xpose.msra.mxu0 %v937
    %1324 = vmatpush.xpose.msra.mxu0 %v934
    %1325 = vmatpush.xpose.msra.mxu0 %v931
    %1326 = vmatpush.xpose.msra.mxu0 %v928
    %1327 = vmatpush.xpose.msra.mxu0 %v925
    %1328 = vmatpush.xpose.msra.mxu0 %v922
    %1329 = vmatpush.xpose.msra.mxu0 %v919
    %1330 = vmatpush.xpose.msra.mxu0 %v916
    %1331 = vmatpush.xpose.msra.mxu0 %v913
    %1332 = vmatmul.f32.gmra.mxu0 %v286
    %v1333 = vpop.f32.mrf.mxu0
    %v1334 = vadd.f32 %v282, %v1333
    %1335 = vdwg.mxu0
    %1336 = vmatpush.xpose.msra.mxu0 %v1006
    %1337 = vmatpush.xpose.msra.mxu0 %v1003
    %1338 = vmatpush.xpose.msra.mxu0 %v1000
    %1339 = vmatpush.xpose.msra.mxu0 %v997
    %1340 = vmatpush.xpose.msra.mxu0 %v994
    %1341 = vmatpush.xpose.msra.mxu0 %v991
    %1342 = vmatpush.xpose.msra.mxu0 %v988
    %1343 = vmatpush.xpose.msra.mxu0 %v985
    %1344 = vmatpush.xpose.msra.mxu0 %v982
    %1345 = vmatpush.xpose.msra.mxu0 %v979
    %1346 = vmatpush.xpose.msra.mxu0 %v976
    %1347 = vmatpush.xpose.msra.mxu0 %v973
    %1348 = vmatpush.xpose.msra.mxu0 %v970
    %1349 = vmatpush.xpose.msra.mxu0 %v967
    %1350 = vmatpush.xpose.msra.mxu0 %v964
    %1351 = vmatpush.xpose.msra.mxu0 %v961
    %1352 = vmatmul.f32.gmra.mxu0 %v286
    %v1353 = vpop.f32.mrf.mxu0
    %v1354 = vadd.f32 %v282, %v1353
    %1355 = vdwg.mxu0
    %1356 = vmatpush.xpose.msra.mxu0 %v1054
    %1357 = vmatpush.xpose.msra.mxu0 %v1051
    %1358 = vmatpush.xpose.msra.mxu0 %v1048
    %1359 = vmatpush.xpose.msra.mxu0 %v1045
    %1360 = vmatpush.xpose.msra.mxu0 %v1042
    %1361 = vmatpush.xpose.msra.mxu0 %v1039
    %1362 = vmatpush.xpose.msra.mxu0 %v1036
    %1363 = vmatpush.xpose.msra.mxu0 %v1033
    %1364 = vmatpush.xpose.msra.mxu0 %v1030
    %1365 = vmatpush.xpose.msra.mxu0 %v1027
    %1366 = vmatpush.xpose.msra.mxu0 %v1024
    %1367 = vmatpush.xpose.msra.mxu0 %v1021
    %1368 = vmatpush.xpose.msra.mxu0 %v1018
    %1369 = vmatpush.xpose.msra.mxu0 %v1015
    %1370 = vmatpush.xpose.msra.mxu0 %v1012
    %1371 = vmatpush.xpose.msra.mxu0 %v1009
    %1372 = vmatmul.f32.gmra.mxu0 %v286
    %v1373 = vpop.f32.mrf.mxu0
    %v1374 = vadd.f32 %v282, %v1373
    %1375 = vdwg.mxu0
    %v1376 = vmax.f32 %v1074, 0.0
    %v1377 = vmax.f32 %v1094, 0.0
    %v1378 = vmax.f32 %v1114, 0.0
    %v1379 = vmax.f32 %v1134, 0.0
    %v1380 = vmax.f32 %v1154, 0.0
    %v1381 = vmax.f32 %v1174, 0.0
    %v1382 = vmax.f32 %v1194, 0.0
    %v1383 = vmax.f32 %v1214, 0.0
    %v1384 = vmax.f32 %v1234, 0.0
    %v1385 = vmax.f32 %v1254, 0.0
    %v1386 = vmax.f32 %v1274, 0.0
    %v1387 = vmax.f32 %v1294, 0.0
    %v1388 = vmax.f32 %v1314, 0.0
    %v1389 = vmax.f32 %v1334, 0.0
    %v1390 = vmax.f32 %v1354, 0.0
    %v1391 = vmax.f32 %v1374, 0.0
    %v1392 = vld [vmem:[%s3] sm:$0x3]
    %v1393 = vld [vmem:[%s4] sm:$0x3]
    %1395 = vset.pattern.permute.xlu0 0
    %1396 = vperm.xlu0 %1395, %v1393
    %v1397 = vpop.permute.xlu0 %1396
    %vm1399 = vcmask 39936
    %v1401 = vsel %vm1399, %v1392, 0
    %vm1403 = vcmask 1044480
    %v1405 = vsel %vm1403, %v1376, 0
    %v1408 = vsel %vm1403, %v1377, 0
    %v1411 = vsel %vm1403, %v1378, 0
    %v1414 = vsel %vm1403, %v1379, 0
    %v1417 = vsel %vm1403, %v1380, 0
    %v1420 = vsel %vm1403, %v1381, 0
    %v1423 = vsel %vm1403, %v1382, 0
    %v1426 = vsel %vm1403, %v1383, 0
    %v1429 = vsel %vm1403, %v1384, 0
    %v1432 = vsel %vm1403, %v1385, 0
    %v1435 = vsel %vm1403, %v1386, 0
    %v1438 = vsel %vm1403, %v1387, 0
    %v1441 = vsel %vm1403, %v1388, 0
    %v1444 = vsel %vm1403, %v1389, 0
    %v1447 = vsel %vm1403, %v1390, 0
    %v1450 = vsel %vm1403, %v1391, 0
    %1452 = vmatpush.msra.mxu0 0.0
    %1453 = vmatpush.msra.mxu0 0.0
    %1454 = vmatpush.msra.mxu0 0.0
    %1455 = vmatpush.msra.mxu0 0.0
    %1456 = vmatpush.msra.mxu0 0.0
    %1457 = vmatpush.msra.mxu0 0.0
    %1458 = vmatpush.msra.mxu0 0.0
    %1459 = vmatpush.msra.mxu0 0.0
    %1460 = vmatpush.msra.mxu0 0.0
    %1461 = vmatpush.msra.mxu0 0.0
    %1462 = vmatpush.msra.mxu0 0.0
    %1463 = vmatpush.msra.mxu0 0.0
    %1464 = vmatpush.msra.mxu0 0.0
    %1465 = vmatpush.msra.mxu0 0.0
    %1466 = vmatpush.msra.mxu0 0.0
    %1467 = vmatpush.msra.mxu0 %v1405
    %1468 = vmatmul.f32.gmra.mxu0 %v1401
    %v1469 = vpop.f32.mrf.mxu0
    %v1470 = vadd.f32 %v1397, %v1469
    %1471 = vdwg.mxu0
    %1472 = vmatpush.msra.mxu0 0.0
    %1473 = vmatpush.msra.mxu0 0.0
    %1474 = vmatpush.msra.mxu0 0.0
    %1475 = vmatpush.msra.mxu0 0.0
    %1476 = vmatpush.msra.mxu0 0.0
    %1477 = vmatpush.msra.mxu0 0.0
    %1478 = vmatpush.msra.mxu0 0.0
    %1479 = vmatpush.msra.mxu0 0.0
    %1480 = vmatpush.msra.mxu0 0.0
    %1481 = vmatpush.msra.mxu0 0.0
    %1482 = vmatpush.msra.mxu0 0.0
    %1483 = vmatpush.msra.mxu0 0.0
    %1484 = vmatpush.msra.mxu0 0.0
    %1485 = vmatpush.msra.mxu0 0.0
    %1486 = vmatpush.msra.mxu0 0.0
    %1487 = vmatpush.msra.mxu0 %v1408
    %1488 = vmatmul.f32.gmra.mxu0 %v1401
    %v1489 = vpop.f32.mrf.mxu0
    %v1490 = vadd.f32 %v1397, %v1489
    %1491 = vdwg.mxu0
    %1492 = vmatpush.msra.mxu0 0.0
    %1493 = vmatpush.msra.mxu0 0.0
    %1494 = vmatpush.msra.mxu0 0.0
    %1495 = vmatpush.msra.mxu0 0.0
    %1496 = vmatpush.msra.mxu0 0.0
    %1497 = vmatpush.msra.mxu0 0.0
    %1498 = vmatpush.msra.mxu0 0.0
    %1499 = vmatpush.msra.mxu0 0.0
    %1500 = vmatpush.msra.mxu0 0.0
    %1501 = vmatpush.msra.mxu0 0.0
    %1502 = vmatpush.msra.mxu0 0.0
    %1503 = vmatpush.msra.mxu0 0.0
    %1504 = vmatpush.msra.mxu0 0.0
    %1505 = vmatpush.msra.mxu0 0.0
    %1506 = vmatpush.msra.mxu0 0.0
    %1507 = vmatpush.msra.mxu0 %v1411
    %1508 = vmatmul.f32.gmra.mxu0 %v1401
    %v1509 = vpop.f32.mrf.mxu0
    %v1510 = vadd.f32 %v1397, %v1509
    %1511 = vdwg.mxu0
    %1512 = vmatpush.msra.mxu0 0.0
    %1513 = vmatpush.msra.mxu0 0.0
    %1514 = vmatpush.msra.mxu0 0.0
    %1515 = vmatpush.msra.mxu0 0.0
    %1516 = vmatpush.msra.mxu0 0.0
    %1517 = vmatpush.msra.mxu0 0.0
    %1518 = vmatpush.msra.mxu0 0.0
    %1519 = vmatpush.msra.mxu0 0.0
    %1520 = vmatpush.msra.mxu0 0.0
    %1521 = vmatpush.msra.mxu0 0.0
    %1522 = vmatpush.msra.mxu0 0.0
    %1523 = vmatpush.msra.mxu0 0.0
    %1524 = vmatpush.msra.mxu0 0.0
    %1525 = vmatpush.msra.mxu0 0.0
    %1526 = vmatpush.msra.mxu0 0.0
    %1527 = vmatpush.msra.mxu0 %v1414
    %1528 = vmatmul.f32.gmra.mxu0 %v1401
    %v1529 = vpop.f32.mrf.mxu0
    %v1530 = vadd.f32 %v1397, %v1529
    %1531 = vdwg.mxu0
    %1532 = vmatpush.msra.mxu0 0.0
    %1533 = vmatpush.msra.mxu0 0.0
    %1534 = vmatpush.msra.mxu0 0.0
    %1535 = vmatpush.msra.mxu0 0.0
    %1536 = vmatpush.msra.mxu0 0.0
    %1537 = vmatpush.msra.mxu0 0.0
    %1538 = vmatpush.msra.mxu0 0.0
    %1539 = vmatpush.msra.mxu0 0.0
    %1540 = vmatpush.msra.mxu0 0.0
    %1541 = vmatpush.msra.mxu0 0.0
    %1542 = vmatpush.msra.mxu0 0.0
    %1543 = vmatpush.msra.mxu0 0.0
    %1544 = vmatpush.msra.mxu0 0.0
    %1545 = vmatpush.msra.mxu0 0.0
    %1546 = vmatpush.msra.mxu0 0.0
    %1547 = vmatpush.msra.mxu0 %v1417
    %1548 = vmatmul.f32.gmra.mxu0 %v1401
    %v1549 = vpop.f32.mrf.mxu0
    %v1550 = vadd.f32 %v1397, %v1549
    %1551 = vdwg.mxu0
    %1552 = vmatpush.msra.mxu0 0.0
    %1553 = vmatpush.msra.mxu0 0.0
    %1554 = vmatpush.msra.mxu0 0.0
    %1555 = vmatpush.msra.mxu0 0.0
    %1556 = vmatpush.msra.mxu0 0.0
    %1557 = vmatpush.msra.mxu0 0.0
    %1558 = vmatpush.msra.mxu0 0.0
    %1559 = vmatpush.msra.mxu0 0.0
    %1560 = vmatpush.msra.mxu0 0.0
    %1561 = vmatpush.msra.mxu0 0.0
    %1562 = vmatpush.msra.mxu0 0.0
    %1563 = vmatpush.msra.mxu0 0.0
    %1564 = vmatpush.msra.mxu0 0.0
    %1565 = vmatpush.msra.mxu0 0.0
    %1566 = vmatpush.msra.mxu0 0.0
    %1567 = vmatpush.msra.mxu0 %v1420
    %1568 = vmatmul.f32.gmra.mxu0 %v1401
    %v1569 = vpop.f32.mrf.mxu0
    %v1570 = vadd.f32 %v1397, %v1569
    %1571 = vdwg.mxu0
    %1572 = vmatpush.msra.mxu0 0.0
    %1573 = vmatpush.msra.mxu0 0.0
    %1574 = vmatpush.msra.mxu0 0.0
    %1575 = vmatpush.msra.mxu0 0.0
    %1576 = vmatpush.msra.mxu0 0.0
    %1577 = vmatpush.msra.mxu0 0.0
    %1578 = vmatpush.msra.mxu0 0.0
    %1579 = vmatpush.msra.mxu0 0.0
    %1580 = vmatpush.msra.mxu0 0.0
    %1581 = vmatpush.msra.mxu0 0.0
    %1582 = vmatpush.msra.mxu0 0.0
    %1583 = vmatpush.msra.mxu0 0.0
    %1584 = vmatpush.msra.mxu0 0.0
    %1585 = vmatpush.msra.mxu0 0.0
    %1586 = vmatpush.msra.mxu0 0.0
    %1587 = vmatpush.msra.mxu0 %v1423
    %1588 = vmatmul.f32.gmra.mxu0 %v1401
    %v1589 = vpop.f32.mrf.mxu0
    %v1590 = vadd.f32 %v1397, %v1589
    %1591 = vdwg.mxu0
    %1592 = vmatpush.msra.mxu0 0.0
    %1593 = vmatpush.msra.mxu0 0.0
    %1594 = vmatpush.msra.mxu0 0.0
    %1595 = vmatpush.msra.mxu0 0.0
    %1596 = vmatpush.msra.mxu0 0.0
    %1597 = vmatpush.msra.mxu0 0.0
    %1598 = vmatpush.msra.mxu0 0.0
    %1599 = vmatpush.msra.mxu0 0.0
    %1600 = vmatpush.msra.mxu0 0.0
    %1601 = vmatpush.msra.mxu0 0.0
    %1602 = vmatpush.msra.mxu0 0.0
    %1603 = vmatpush.msra.mxu0 0.0
    %1604 = vmatpush.msra.mxu0 0.0
    %1605 = vmatpush.msra.mxu0 0.0
    %1606 = vmatpush.msra.mxu0 0.0
    %1607 = vmatpush.msra.mxu0 %v1426
    %1608 = vmatmul.f32.gmra.mxu0 %v1401
    %v1609 = vpop.f32.mrf.mxu0
    %v1610 = vadd.f32 %v1397, %v1609
    %1611 = vdwg.mxu0
    %1612 = vmatpush.msra.mxu0 0.0
    %1613 = vmatpush.msra.mxu0 0.0
    %1614 = vmatpush.msra.mxu0 0.0
    %1615 = vmatpush.msra.mxu0 0.0
    %1616 = vmatpush.msra.mxu0 0.0
    %1617 = vmatpush.msra.mxu0 0.0
    %1618 = vmatpush.msra.mxu0 0.0
    %1619 = vmatpush.msra.mxu0 0.0
    %1620 = vmatpush.msra.mxu0 0.0
    %1621 = vmatpush.msra.mxu0 0.0
    %1622 = vmatpush.msra.mxu0 0.0
    %1623 = vmatpush.msra.mxu0 0.0
    %1624 = vmatpush.msra.mxu0 0.0
    %1625 = vmatpush.msra.mxu0 0.0
    %1626 = vmatpush.msra.mxu0 0.0
    %1627 = vmatpush.msra.mxu0 %v1429
    %1628 = vmatmul.f32.gmra.mxu0 %v1401
    %v1629 = vpop.f32.mrf.mxu0
    %v1630 = vadd.f32 %v1397, %v1629
    %1631 = vdwg.mxu0
    %1632 = vmatpush.msra.mxu0 0.0
    %1633 = vmatpush.msra.mxu0 0.0
    %1634 = vmatpush.msra.mxu0 0.0
    %1635 = vmatpush.msra.mxu0 0.0
    %1636 = vmatpush.msra.mxu0 0.0
    %1637 = vmatpush.msra.mxu0 0.0
    %1638 = vmatpush.msra.mxu0 0.0
    %1639 = vmatpush.msra.mxu0 0.0
    %1640 = vmatpush.msra.mxu0 0.0
    %1641 = vmatpush.msra.mxu0 0.0
    %1642 = vmatpush.msra.mxu0 0.0
    %1643 = vmatpush.msra.mxu0 0.0
    %1644 = vmatpush.msra.mxu0 0.0
    %1645 = vmatpush.msra.mxu0 0.0
    %1646 = vmatpush.msra.mxu0 0.0
    %1647 = vmatpush.msra.mxu0 %v1432
    %1648 = vmatmul.f32.gmra.mxu0 %v1401
    %v1649 = vpop.f32.mrf.mxu0
    %v1650 = vadd.f32 %v1397, %v1649
    %1651 = vdwg.mxu0
    %1652 = vmatpush.msra.mxu0 0.0
    %1653 = vmatpush.msra.mxu0 0.0
    %1654 = vmatpush.msra.mxu0 0.0
    %1655 = vmatpush.msra.mxu0 0.0
    %1656 = vmatpush.msra.mxu0 0.0
    %1657 = vmatpush.msra.mxu0 0.0
    %1658 = vmatpush.msra.mxu0 0.0
    %1659 = vmatpush.msra.mxu0 0.0
    %1660 = vmatpush.msra.mxu0 0.0
    %1661 = vmatpush.msra.mxu0 0.0
    %1662 = vmatpush.msra.mxu0 0.0
    %1663 = vmatpush.msra.mxu0 0.0
    %1664 = vmatpush.msra.mxu0 0.0
    %1665 = vmatpush.msra.mxu0 0.0
    %1666 = vmatpush.msra.mxu0 0.0
    %1667 = vmatpush.msra.mxu0 %v1435
    %1668 = vmatmul.f32.gmra.mxu0 %v1401
    %v1669 = vpop.f32.mrf.mxu0
    %v1670 = vadd.f32 %v1397, %v1669
    %1671 = vdwg.mxu0
    %1672 = vmatpush.msra.mxu0 0.0
    %1673 = vmatpush.msra.mxu0 0.0
    %1674 = vmatpush.msra.mxu0 0.0
    %1675 = vmatpush.msra.mxu0 0.0
    %1676 = vmatpush.msra.mxu0 0.0
    %1677 = vmatpush.msra.mxu0 0.0
    %1678 = vmatpush.msra.mxu0 0.0
    %1679 = vmatpush.msra.mxu0 0.0
    %1680 = vmatpush.msra.mxu0 0.0
    %1681 = vmatpush.msra.mxu0 0.0
    %1682 = vmatpush.msra.mxu0 0.0
    %1683 = vmatpush.msra.mxu0 0.0
    %1684 = vmatpush.msra.mxu0 0.0
    %1685 = vmatpush.msra.mxu0 0.0
    %1686 = vmatpush.msra.mxu0 0.0
    %1687 = vmatpush.msra.mxu0 %v1438
    %1688 = vmatmul.f32.gmra.mxu0 %v1401
    %v1689 = vpop.f32.mrf.mxu0
    %v1690 = vadd.f32 %v1397, %v1689
    %1691 = vdwg.mxu0
    %1692 = vmatpush.msra.mxu0 0.0
    %1693 = vmatpush.msra.mxu0 0.0
    %1694 = vmatpush.msra.mxu0 0.0
    %1695 = vmatpush.msra.mxu0 0.0
    %1696 = vmatpush.msra.mxu0 0.0
    %1697 = vmatpush.msra.mxu0 0.0
    %1698 = vmatpush.msra.mxu0 0.0
    %1699 = vmatpush.msra.mxu0 0.0
    %1700 = vmatpush.msra.mxu0 0.0
    %1701 = vmatpush.msra.mxu0 0.0
    %1702 = vmatpush.msra.mxu0 0.0
    %1703 = vmatpush.msra.mxu0 0.0
    %1704 = vmatpush.msra.mxu0 0.0
    %1705 = vmatpush.msra.mxu0 0.0
    %1706 = vmatpush.msra.mxu0 0.0
    %1707 = vmatpush.msra.mxu0 %v1441
    %1708 = vmatmul.f32.gmra.mxu0 %v1401
    %v1709 = vpop.f32.mrf.mxu0
    %v1710 = vadd.f32 %v1397, %v1709
    %1711 = vdwg.mxu0
    %1712 = vmatpush.msra.mxu0 0.0
    %1713 = vmatpush.msra.mxu0 0.0
    %1714 = vmatpush.msra.mxu0 0.0
    %1715 = vmatpush.msra.mxu0 0.0
    %1716 = vmatpush.msra.mxu0 0.0
    %1717 = vmatpush.msra.mxu0 0.0
    %1718 = vmatpush.msra.mxu0 0.0
    %1719 = vmatpush.msra.mxu0 0.0
    %1720 = vmatpush.msra.mxu0 0.0
    %1721 = vmatpush.msra.mxu0 0.0
    %1722 = vmatpush.msra.mxu0 0.0
    %1723 = vmatpush.msra.mxu0 0.0
    %1724 = vmatpush.msra.mxu0 0.0
    %1725 = vmatpush.msra.mxu0 0.0
    %1726 = vmatpush.msra.mxu0 0.0
    %1727 = vmatpush.msra.mxu0 %v1444
    %1728 = vmatmul.f32.gmra.mxu0 %v1401
    %v1729 = vpop.f32.mrf.mxu0
    %v1730 = vadd.f32 %v1397, %v1729
    %1731 = vdwg.mxu0
    %1732 = vmatpush.msra.mxu0 0.0
    %1733 = vmatpush.msra.mxu0 0.0
    %1734 = vmatpush.msra.mxu0 0.0
    %1735 = vmatpush.msra.mxu0 0.0
    %1736 = vmatpush.msra.mxu0 0.0
    %1737 = vmatpush.msra.mxu0 0.0
    %1738 = vmatpush.msra.mxu0 0.0
    %1739 = vmatpush.msra.mxu0 0.0
    %1740 = vmatpush.msra.mxu0 0.0
    %1741 = vmatpush.msra.mxu0 0.0
    %1742 = vmatpush.msra.mxu0 0.0
    %1743 = vmatpush.msra.mxu0 0.0
    %1744 = vmatpush.msra.mxu0 0.0
    %1745 = vmatpush.msra.mxu0 0.0
    %1746 = vmatpush.msra.mxu0 0.0
    %1747 = vmatpush.msra.mxu0 %v1447
    %1748 = vmatmul.f32.gmra.mxu0 %v1401
    %v1749 = vpop.f32.mrf.mxu0
    %v1750 = vadd.f32 %v1397, %v1749
    %1751 = vdwg.mxu0
    %1752 = vmatpush.msra.mxu0 0.0
    %1753 = vmatpush.msra.mxu0 0.0
    %1754 = vmatpush.msra.mxu0 0.0
    %1755 = vmatpush.msra.mxu0 0.0
    %1756 = vmatpush.msra.mxu0 0.0
    %1757 = vmatpush.msra.mxu0 0.0
    %1758 = vmatpush.msra.mxu0 0.0
    %1759 = vmatpush.msra.mxu0 0.0
    %1760 = vmatpush.msra.mxu0 0.0
    %1761 = vmatpush.msra.mxu0 0.0
    %1762 = vmatpush.msra.mxu0 0.0
    %1763 = vmatpush.msra.mxu0 0.0
    %1764 = vmatpush.msra.mxu0 0.0
    %1765 = vmatpush.msra.mxu0 0.0
    %1766 = vmatpush.msra.mxu0 0.0
    %1767 = vmatpush.msra.mxu0 %v1450
    %1768 = vmatmul.f32.gmra.mxu0 %v1401
    %v1769 = vpop.f32.mrf.mxu0
    %v1770 = vadd.f32 %v1397, %v1769
    %1771 = vdwg.mxu0
    %v1788 = vrot.slane %v1490, 6
    %v1789 = vrot.slane %v1510, 4
    %v1790 = vrot.slane %v1530, 2
    %v1791 = vrot.slane %v1570, 6
    %v1792 = vrot.slane %v1590, 4
    %v1793 = vrot.slane %v1610, 2
    %v1794 = vrot.slane %v1650, 6
    %v1795 = vrot.slane %v1670, 4
    %v1796 = vrot.slane %v1690, 2
    %v1797 = vrot.slane %v1730, 6
    %v1798 = vrot.slane %v1750, 4
    %v1799 = vrot.slane %v1770, 2
    %vm1800 = vcmask 1041408
    %v1801 = vsel %vm1800, %v1470, %v1788
    %vm1802 = vcmask 1045508
    %v1803 = vsel %vm1802, %v1789, %v1790
    %vm1804 = vcmask 1043456
    %v1805 = vsel %vm1804, %v1801, %v1803
    %v1806 = vsel %vm1800, %v1550, %v1791
    %v1807 = vsel %vm1802, %v1792, %v1793
    %v1808 = vsel %vm1804, %v1806, %v1807
    %v1809 = vsel %vm1800, %v1630, %v1794
    %v1810 = vsel %vm1802, %v1795, %v1796
    %v1811 = vsel %vm1804, %v1809, %v1810
    %v1812 = vsel %vm1800, %v1710, %v1797
    %v1813 = vsel %vm1802, %v1798, %v1799
    %v1814 = vsel %vm1804, %v1812, %v1813
    %1819 = vst [vmem:[#allocation2] sm:$0xff] %v1805
    %1820 = vst [vmem:[#allocation2 + $0x8] sm:$0xff] %v1808
    %1821 = vst [vmem:[#allocation2 + $0x10] sm:$0xff] %v1811
    %1822 = vst [vmem:[#allocation2 + $0x18] sm:$0xff] %v1814
    // Predicated region
    $region22: #{tpu_custom_call.1} parent=1 // pred_check
      _
    $region23: #{tpu_custom_call.1} parent=1 // pred_check_branch
      %1824 = sbr.rel (0) target = $region25
    $region24: #{tpu_custom_call.1} parent=1 // pred_region
      %1826 = vsyncadd [#allocation3], 0
      %s1828 = sshll.u32 [#allocation2], 4
      %s1829 = int_to_ptr.vmem [resolvable:$true] %s1828
      %s1830 = sshll.u32 %s5, 4
      %s1831 = int_to_ptr.hbm [resolvable:$true] %s1830
      %1833 = dma.vmem_to_hbm [thread:$0]  %s1829, 512, %s1831, [#allocation3]
    $region25: #{tpu_custom_call.1} parent=1 // pred_fallthru
      _
    // Predicated region
    $region26: #{tpu_custom_call.1} parent=1 // pred_check
      _
    $region27: #{tpu_custom_call.1} parent=1 // pred_check_branch
      %1835 = sbr.rel (0) target = $region29
    $region28: #{tpu_custom_call.1} parent=1 // pred_region
      %1837 = dma.done [#allocation3], 512
    $region29: #{tpu_custom_call.1} parent=1 // pred_fallthru
      _
    %1838 = vsyncpa [#allocation3], 1

</llo_original>
